<compile_context>
chip_gen: v7x
topology: tpu7x:2x2x1
jax: 0.10.0
libtpu: 0.0.40
codegen_flags: <defaults>
</compile_context>

<pallas_src>
import jax
import jax.numpy as jnp
from jax.experimental import pallas as pl
from jax.experimental.pallas import tpu as pltpu


def _generator_kernel(z_ref, w1_ref, b1_ref, w2_ref, b2_ref, out_ref):
    # ---- Layer 1: hidden = relu(z @ W1 + b1) ------------------------------
    # K = noise_dim is tiny (2): skip the MXU, do K broadcast FMAs on the VPU.
    # Bias is folded into the accumulator init (no separate h + b1 step).
    z = z_ref[...]                                   # [TB, K]
    w1 = w1_ref[...]                                 # [K, Hpad]
    tb = z.shape[0]
    h = jnp.broadcast_to(b1_ref[...], (tb, w1.shape[1]))   # init with bias
    for k in range(z.shape[1]):                      # static unroll, K tiny
        h = h + z[:, k:k + 1] * w1[k:k + 1, :]
    h = jnp.maximum(h, 0.0)                          # ReLU

    # ---- Layer 2: out = hidden @ W2 + b2 ----------------------------------
    # K = N = 128 (padded) -> MXU with f32 accumulation; output tile is
    # lane-dense (last dim 128) so stores are unmasked.
    o = jnp.dot(h, w2_ref[...], preferred_element_type=jnp.float32)
    out_ref[...] = (o + b2_ref[...]).astype(out_ref.dtype)


def generator_forward(z, w1, b1, w2, b2, *, block_batch=512):
    """Forward pass of the Generator.

    z  : [B, noise_dim]
    w1 : [noise_dim, hidden]   (transpose of nn.Linear weight)
    b1 : [hidden]
    w2 : [hidden, output_dim]
    b2 : [output_dim]
    returns [B, output_dim] float32
    """
    batch, noise_dim = z.shape
    hidden = w1.shape[1]
    out_dim = w2.shape[1]

    LANE, SUB = 128, 8
    h_pad = ((hidden + LANE - 1) // LANE) * LANE      # 100 -> 128
    o_pad = ((out_dim + LANE - 1) // LANE) * LANE     # 2   -> 128 (lane-dense out)

    # Batch tiling: large tiles (up to block_batch rows), multiple of 8.
    tb = min(block_batch, ((batch + SUB - 1) // SUB) * SUB)
    b_pad = ((batch + tb - 1) // tb) * tb
    grid = (b_pad // tb,)

    f32 = jnp.float32
    z_p = jnp.zeros((b_pad, noise_dim), f32).at[:batch].set(z.astype(f32))
    w1_p = jnp.zeros((noise_dim, h_pad), f32).at[:, :hidden].set(w1.astype(f32))
    b1_p = jnp.zeros((1, h_pad), f32).at[0, :hidden].set(b1.reshape(-1).astype(f32))
    w2_p = jnp.zeros((h_pad, o_pad), f32).at[:hidden, :out_dim].set(w2.astype(f32))
    b2_p = jnp.zeros((1, o_pad), f32).at[0, :out_dim].set(b2.reshape(-1).astype(f32))

    flops = 2 * b_pad * (noise_dim * h_pad + h_pad * o_pad)
    bytes_accessed = 4 * (z_p.size + w1_p.size + b1_p.size + w2_p.size
                          + b2_p.size + b_pad * o_pad)

    out = pl.pallas_call(
        _generator_kernel,
        out_shape=jax.ShapeDtypeStruct((b_pad, o_pad), f32),
        grid=grid,
        in_specs=[
            pl.BlockSpec((tb, noise_dim), lambda i: (i, 0)),   # z streams
            pl.BlockSpec((noise_dim, h_pad), lambda i: (0, 0)),  # weights stay
            pl.BlockSpec((1, h_pad), lambda i: (0, 0)),          # resident
            pl.BlockSpec((h_pad, o_pad), lambda i: (0, 0)),
            pl.BlockSpec((1, o_pad), lambda i: (0, 0)),
        ],
        out_specs=pl.BlockSpec((tb, o_pad), lambda i: (i, 0)),
        compiler_params=pltpu.CompilerParams(
            dimension_semantics=("parallel",)),   # v7x: shard batch over 2 TCs
        cost_estimate=pl.CostEstimate(
            flops=flops, transcendentals=0, bytes_accessed=bytes_accessed),
    )(z_p, w1_p, b1_p, w2_p, b2_p)

    # Slice padding off (padded rows/lanes are dead weight only).
    return out[:batch, :out_dim]


def init_generator_params(key, noise_dim=2, output_dim=2, hidden_dim=100):
    """Deterministic init mimicking nn.Linear default U[-1/sqrt(fan_in), +...].
    Weights stored [in_features, out_features]; biases as flat vectors."""
    k1, k2, k3, k4 = jax.random.split(key, 4)
    lim1 = 1.0 / jnp.sqrt(noise_dim)
    lim2 = 1.0 / jnp.sqrt(hidden_dim)
    w1 = jax.random.uniform(k1, (noise_dim, hidden_dim), jnp.float32, -lim1, lim1)
    b1 = jax.random.uniform(k2, (hidden_dim,), jnp.float32, -lim1, lim1)
    w2 = jax.random.uniform(k3, (hidden_dim, output_dim), jnp.float32, -lim2, lim2)
    b2 = jax.random.uniform(k4, (output_dim,), jnp.float32, -lim2, lim2)
    return w1, b1, w2, b2


def _reference(z, w1, b1, w2, b2):
    return jnp.maximum(z @ w1 + b1, 0.0) @ w2 + b2


if __name__ == "__main__":
    noise_dim, output_dim, hidden_dim = 2, 2, 100

    key = jax.random.PRNGKey(0)
    k_params, k_z1, k_z2 = jax.random.split(key, 3)
    w1, b1, w2, b2 = init_generator_params(
        k_params, noise_dim=noise_dim, output_dim=output_dim, hidden_dim=hidden_dim)

    # Small batch (single tile).
    z_small = jax.random.normal(k_z1, (8, noise_dim), jnp.float32)
    out_small = jax.block_until_ready(generator_forward(z_small, w1, b1, w2, b2))
    ref_small = _reference(z_small, w1, b1, w2, b2)
    assert out_small.shape == (8, output_dim)
    assert jnp.allclose(out_small, ref_small, atol=1e-5, rtol=1e-5)

    # Larger, ragged batch exercising the batch grid (3 tiles of 256 rows,
    # padded from 600 -> 768).
    z_big = jax.random.normal(k_z2, (600, noise_dim), jnp.float32)
    out_big = jax.block_until_ready(
        generator_forward(z_big, w1, b1, w2, b2, block_batch=256))
    ref_big = _reference(z_big, w1, b1, w2, b2)
    assert out_big.shape == (600, output_dim)
    assert jnp.allclose(out_big, ref_big, atol=1e-5, rtol=1e-5)

    print("KERNEL_OK")
</pallas_src>

<mosaic_0001>
module attributes {stable_mosaic.version = 11 : i64} {
  func.func @_generator_kernel(%arg0: i32, %arg1: memref<8x2xf32, #tpu.memory_space<vmem>>, %arg2: memref<2x128xf32, #tpu.memory_space<vmem>>, %arg3: memref<1x128xf32, #tpu.memory_space<vmem>>, %arg4: memref<128x128xf32, #tpu.memory_space<vmem>>, %arg5: memref<1x128xf32, #tpu.memory_space<vmem>>, %arg6: memref<8x128xf32, #tpu.memory_space<vmem>>) attributes {dimension_semantics = [#tpu.dimension_semantics<parallel>], iteration_bounds = array<i64: 1>, scalar_prefetch = 0 : i64, scratch_operands = 0 : i64, tpu.core_type = #tpu.core_type<tc>, window_params = [{transform_indices = @transform_0, window_bounds = array<i64: 8, 2>}, {pipeline_mode = #tpu.pipeline_mode<synchronous>, transform_indices = @transform_1, window_bounds = array<i64: 2, 128>}, {pipeline_mode = #tpu.pipeline_mode<synchronous>, transform_indices = @transform_2, window_bounds = array<i64: 1, 128>}, {pipeline_mode = #tpu.pipeline_mode<synchronous>, transform_indices = @transform_3, window_bounds = array<i64: 128, 128>}, {pipeline_mode = #tpu.pipeline_mode<synchronous>, transform_indices = @transform_4, window_bounds = array<i64: 1, 128>}, {transform_indices = @transform_5, window_bounds = array<i64: 8, 128>}]} {
    %c0 = arith.constant 0 : index
    %c0_0 = arith.constant 0 : index
    %0 = vector.load %arg1[%c0, %c0_0] : memref<8x2xf32, #tpu.memory_space<vmem>>, vector<8x2xf32>
    %c0_1 = arith.constant 0 : index
    %c0_2 = arith.constant 0 : index
    %1 = vector.load %arg2[%c0_1, %c0_2] : memref<2x128xf32, #tpu.memory_space<vmem>>, vector<2x128xf32>
    %c0_3 = arith.constant 0 : index
    %c0_4 = arith.constant 0 : index
    %2 = vector.load %arg3[%c0_3, %c0_4] : memref<1x128xf32, #tpu.memory_space<vmem>>, vector<1x128xf32>
    %3 = vector.shape_cast %2 : vector<1x128xf32> to vector<1x128xf32>
    %4 = vector.broadcast %3 : vector<1x128xf32> to vector<8x128xf32>
    %5 = vector.extract_strided_slice %0 {offsets = [0, 0], sizes = [8, 1], strides = [1, 1]} : vector<8x2xf32> to vector<8x1xf32>
    %6 = vector.extract_strided_slice %1 {offsets = [0, 0], sizes = [1, 128], strides = [1, 1]} : vector<2x128xf32> to vector<1x128xf32>
    %7 = vector.broadcast %5 : vector<8x1xf32> to vector<8x128xf32>
    %8 = vector.broadcast %6 : vector<1x128xf32> to vector<8x128xf32>
    %9 = arith.mulf %7, %8 : vector<8x128xf32>
    %10 = arith.addf %4, %9 : vector<8x128xf32>
    %11 = vector.extract_strided_slice %0 {offsets = [0, 1], sizes = [8, 1], strides = [1, 1]} : vector<8x2xf32> to vector<8x1xf32>
    %12 = vector.extract_strided_slice %1 {offsets = [1, 0], sizes = [1, 128], strides = [1, 1]} : vector<2x128xf32> to vector<1x128xf32>
    %13 = vector.broadcast %11 : vector<8x1xf32> to vector<8x128xf32>
    %14 = vector.broadcast %12 : vector<1x128xf32> to vector<8x128xf32>
    %15 = arith.mulf %13, %14 : vector<8x128xf32>
    %16 = arith.addf %10, %15 : vector<8x128xf32>
    %cst = arith.constant 0.000000e+00 : f32
    %17 = vector.broadcast %cst : f32 to vector<8x128xf32>
    %18 = arith.maximumf %16, %17 : vector<8x128xf32>
    %c0_5 = arith.constant 0 : index
    %c0_6 = arith.constant 0 : index
    %19 = vector.load %arg4[%c0_5, %c0_6] : memref<128x128xf32, #tpu.memory_space<vmem>>, vector<128x128xf32>
    %cst_7 = arith.constant dense<0.000000e+00> : vector<8x128xf32>
    %20 = tpu.matmul %18, %19, %cst_7 {dimension_numbers = #tpu.dot_dimension_numbers<[1], [0], [0], [1], [0, 0, 1, 1], [], []>} : vector<8x128xf32>, vector<128x128xf32>, vector<8x128xf32> -> vector<8x128xf32>
    %c0_8 = arith.constant 0 : index
    %c0_9 = arith.constant 0 : index
    %21 = vector.load %arg5[%c0_8, %c0_9] : memref<1x128xf32, #tpu.memory_space<vmem>>, vector<1x128xf32>
    %22 = vector.broadcast %21 : vector<1x128xf32> to vector<8x128xf32>
    %23 = arith.addf %20, %22 : vector<8x128xf32>
    %c0_10 = arith.constant 0 : index
    %c0_11 = arith.constant 0 : index
    %24 = vector.load %arg6[%c0_10, %c0_11] : memref<8x128xf32, #tpu.memory_space<vmem>>, vector<8x128xf32>
    tpu.vector_store %arg6[%c0_10, %c0_11], %23 {strides = array<i32>} : memref<8x128xf32, #tpu.memory_space<vmem>>, vector<8x128xf32>,
    return
  }
  func.func @transform_0(%arg0: i32) -> (i32, i32) {
    %c0_i32 = arith.constant 0 : i32
    %c0_i32_0 = arith.constant 0 : i32
    return %arg0, %c0_i32 : i32, i32
  }
  func.func @transform_1(%arg0: i32) -> (i32, i32) {
    %c0_i32 = arith.constant 0 : i32
    %c0_i32_0 = arith.constant 0 : i32
    %c0_i32_1 = arith.constant 0 : i32
    return %c0_i32, %c0_i32_0 : i32, i32
  }
  func.func @transform_2(%arg0: i32) -> (i32, i32) {
    %c0_i32 = arith.constant 0 : i32
    %c0_i32_0 = arith.constant 0 : i32
    %c0_i32_1 = arith.constant 0 : i32
    return %c0_i32, %c0_i32_0 : i32, i32
  }
  func.func @transform_3(%arg0: i32) -> (i32, i32) {
    %c0_i32 = arith.constant 0 : i32
    %c0_i32_0 = arith.constant 0 : i32
    %c0_i32_1 = arith.constant 0 : i32
    return %c0_i32, %c0_i32_0 : i32, i32
  }
  func.func @transform_4(%arg0: i32) -> (i32, i32) {
    %c0_i32 = arith.constant 0 : i32
    %c0_i32_0 = arith.constant 0 : i32
    %c0_i32_1 = arith.constant 0 : i32
    return %c0_i32, %c0_i32_0 : i32, i32
  }
  func.func @transform_5(%arg0: i32) -> (i32, i32) {
    %c0_i32 = arith.constant 0 : i32
    %c0_i32_0 = arith.constant 0 : i32
    return %arg0, %c0_i32 : i32, i32
  }
}

</mosaic_0001>

<llo_original>
// kernel: tpu_custom_call.1
$region0: #{tpu_custom_call.1}
  #allocation0 [shape = 'u32[]', space=smem, size = 0x4, offset = 0x4, fixed_abs, tag = 'smem constant byte address 0x4 - core index']
  #allocation1 [shape = 'u32[144,128]{1,0:T(1,128)}', space=vmem, size = 0x12000, scoped, tag = 'internal scratch']
  %s0 = inlined_call_operand.vmem [shape: f32[8,2], index: 0, kind: input, shape index: {}]
  %s1 = inlined_call_operand.vmem [shape: f32[2,128], index: 1, kind: input, shape index: {}]
  %s2 = inlined_call_operand.vmem [shape: f32[1,128], index: 2, kind: input, shape index: {}]
  %s3 = inlined_call_operand.hbm [shape: f32[128,128], index: 3, kind: input, shape index: {}]
  %s4 = inlined_call_operand.vmem [shape: f32[1,128], index: 4, kind: input, shape index: {}]
  %s5 = inlined_call_operand.hbm [shape: f32[8,128], index: 5, kind: output, shape index: {}]
  %s6 = sld [smem:[#allocation0]]
  $region34: #{tpu_custom_call.1} parent=0
    _
  %s8 = ssub.s32 1, %s6
  %s9 = scalar_select 0, %s8, %s6
  $region1: #{tpu_custom_call.1} parent=0
    #allocation2 [shape = 'u8[65536]{0}', space=vmem, size = 0x10000, scoped, tag = 'input window, operand 3, single buffered']
    #allocation3 [shape = 's32[1]{0}', space=sflag, size = 0x4, scoped, tag = 'scoped memory for tpu_custom_call.1']
    #allocation4 [shape = 's32[1]{0}', space=sflag, size = 0x4, scoped, tag = 'scoped memory for tpu_custom_call.1']
    #allocation5 [shape = 'u8[4096]{0}', space=vmem, size = 0x1000, scoped, tag = 'output window, operand 0, single buffered']
    %10 = vsyncpa [#allocation3], 0
    %11 = vsyncpa [#allocation4], 0
    // Predicated region
    $region2: #{tpu_custom_call.1} parent=1 // pred_check
      _
    $region3: #{tpu_custom_call.1} parent=1 // pred_check_branch
      %13 = sbr.rel (0) target = $region5
    $region4: #{tpu_custom_call.1} parent=1 // pred_region
      _
    $region5: #{tpu_custom_call.1} parent=1 // pred_fallthru
      _
    // Predicated region
    $region6: #{tpu_custom_call.1} parent=1 // pred_check
      _
    $region7: #{tpu_custom_call.1} parent=1 // pred_check_branch
      %15 = sbr.rel (0) target = $region9
    $region8: #{tpu_custom_call.1} parent=1 // pred_region
      _
    $region9: #{tpu_custom_call.1} parent=1 // pred_fallthru
      _
    // Predicated region
    $region10: #{tpu_custom_call.1} parent=1 // pred_check
      _
    $region11: #{tpu_custom_call.1} parent=1 // pred_check_branch
      %17 = sbr.rel (0) target = $region13
    $region12: #{tpu_custom_call.1} parent=1 // pred_region
      _
    $region13: #{tpu_custom_call.1} parent=1 // pred_fallthru
      _
    // Predicated region
    $region14: #{tpu_custom_call.1} parent=1 // pred_check
      _
    $region15: #{tpu_custom_call.1} parent=1 // pred_check_branch
      %19 = sbr.rel (0) target = $region17
    $region16: #{tpu_custom_call.1} parent=1 // pred_region
      %s21 = ssub.s32 2048, 2048
      %22 = vsyncadd [#allocation3], %s21
      %s23 = sshll.u32 [#allocation2], 4
      %s24 = int_to_ptr.vmem [resolvable:$true] %s23
      %29 = dma.hbm_to_vmem [thread:$0]  %s3, 2048, %s24, [#allocation3], 128, 128, 8
    $region17: #{tpu_custom_call.1} parent=1 // pred_fallthru
      _
    // Predicated region
    $region18: #{tpu_custom_call.1} parent=1 // pred_check
      _
    $region19: #{tpu_custom_call.1} parent=1 // pred_check_branch
      %31 = sbr.rel (0) target = $region21
    $region20: #{tpu_custom_call.1} parent=1 // pred_region
      _
    $region21: #{tpu_custom_call.1} parent=1 // pred_fallthru
      _
    // Predicated region
    $region22: #{tpu_custom_call.1} parent=1 // pred_check
      _
    $region23: #{tpu_custom_call.1} parent=1 // pred_check_branch
      %33 = sbr.rel (0) target = $region25
    $region24: #{tpu_custom_call.1} parent=1 // pred_region
      %34 = dma.done [#allocation3], 2048
    $region25: #{tpu_custom_call.1} parent=1 // pred_fallthru
      _
    %v35 = vld [vmem:[%s0] sm:$0xff]
    %v36 = vld [vmem:[%s1] sm:$0x3]
    %v37 = vld [vmem:[%s2] sm:$0x1]
    %v39 = vlaneseq
    %v40 = vshrl.u32 %v39, 7
    %v41 = vsub.s32 0, %v40
    %v42 = vrot.slane %v37, %v41
    %45 = vset.pattern.permute.xlu0 0
    %46 = vperm.xlu0 %45, %v35
    %v47 = vpop.permute.xlu0 %46
    %v49 = vlaneseq
    %v50 = vshrl.u32 %v49, 7
    %v51 = vsub.s32 0, %v50
    %v52 = vrot.slane %v36, %v51
    %v53 = vmul.f32 %v47, %v52
    %v54 = vadd.f32 %v42, %v53
    %55 = vset.pattern.permute.xlu0 1
    %56 = vperm.xlu0 %55, %v35
    %v57 = vpop.permute.xlu0 %56
    %v59 = vlaneseq
    %v60 = vshrl.u32 %v59, 7
    %v61 = vsub.s32 1, %v60
    %v62 = vrot.slane %v36, %v61
    %v63 = vmul.f32 %v57, %v62
    %v64 = vadd.f32 %v54, %v63
    %v65 = vmax.f32 %v64, 0.0
    %v66 = vld [vmem:[#allocation2] sm:$0xff]
    %v67 = vld [vmem:[#allocation2 + $0x8] sm:$0xff]
    %v68 = vld [vmem:[#allocation2 + $0x10] sm:$0xff]
    %v69 = vld [vmem:[#allocation2 + $0x18] sm:$0xff]
    %v70 = vld [vmem:[#allocation2 + $0x20] sm:$0xff]
    %v71 = vld [vmem:[#allocation2 + $0x28] sm:$0xff]
    %v72 = vld [vmem:[#allocation2 + $0x30] sm:$0xff]
    %v73 = vld [vmem:[#allocation2 + $0x38] sm:$0xff]
    %v74 = vld [vmem:[#allocation2 + $0x40] sm:$0xff]
    %v75 = vld [vmem:[#allocation2 + $0x48] sm:$0xff]
    %v76 = vld [vmem:[#allocation2 + $0x50] sm:$0xff]
    %v77 = vld [vmem:[#allocation2 + $0x58] sm:$0xff]
    %v78 = vld [vmem:[#allocation2 + $0x60] sm:$0xff]
    %v79 = vld [vmem:[#allocation2 + $0x68] sm:$0xff]
    %v80 = vld [vmem:[#allocation2 + $0x70] sm:$0xff]
    %v81 = vld [vmem:[#allocation2 + $0x78] sm:$0xff]
    %v82 = vld [vmem:[%s4] sm:$0x1]
    %v84 = vlaneseq
    %v85 = vshrl.u32 %v84, 7
    %v86 = vsub.s32 0, %v85
    %v87 = vrot.slane %v82, %v86
    %89 = vmatprep.subr.mxu0 0.0
    %90 = vmatpush1.msra.mxu0 %v66
    %91 = vmatprep.subr.mxu0 0.0
    %92 = vmatpush1.msra.mxu0 %v67
    %93 = vmatprep.subr.mxu0 0.0
    %94 = vmatpush1.msra.mxu0 %v68
    %95 = vmatprep.subr.mxu0 0.0
    %96 = vmatpush1.msra.mxu0 %v69
    %97 = vmatprep.subr.mxu0 0.0
    %98 = vmatpush1.msra.mxu0 %v70
    %99 = vmatprep.subr.mxu0 0.0
    %100 = vmatpush1.msra.mxu0 %v71
    %101 = vmatprep.subr.mxu0 0.0
    %102 = vmatpush1.msra.mxu0 %v72
    %103 = vmatprep.subr.mxu0 0.0
    %104 = vmatpush1.msra.mxu0 %v73
    %105 = vmatprep.subr.mxu0 0.0
    %106 = vmatpush1.msra.mxu0 %v74
    %107 = vmatprep.subr.mxu0 0.0
    %108 = vmatpush1.msra.mxu0 %v75
    %109 = vmatprep.subr.mxu0 0.0
    %110 = vmatpush1.msra.mxu0 %v76
    %111 = vmatprep.subr.mxu0 0.0
    %112 = vmatpush1.msra.mxu0 %v77
    %113 = vmatprep.subr.mxu0 0.0
    %114 = vmatpush1.msra.mxu0 %v78
    %115 = vmatprep.subr.mxu0 0.0
    %116 = vmatpush1.msra.mxu0 %v79
    %117 = vmatprep.subr.mxu0 0.0
    %118 = vmatpush1.msra.mxu0 %v80
    %119 = vmatprep.subr.mxu0 0.0
    %120 = vmatpush1.msra.mxu0 %v81
    %121 = vmatprep.subr.mxu0 0.0
    %122 = vmatpush1.msra.mxu0 0.0
    %123 = vmatprep.subr.mxu0 0.0
    %124 = vmatpush1.msra.mxu0 0.0
    %125 = vmatprep.subr.mxu0 0.0
    %126 = vmatpush1.msra.mxu0 0.0
    %127 = vmatprep.subr.mxu0 0.0
    %128 = vmatpush1.msra.mxu0 0.0
    %129 = vmatprep.subr.mxu0 0.0
    %130 = vmatpush1.msra.mxu0 0.0
    %131 = vmatprep.subr.mxu0 0.0
    %132 = vmatpush1.msra.mxu0 0.0
    %133 = vmatprep.subr.mxu0 0.0
    %134 = vmatpush1.msra.mxu0 0.0
    %135 = vmatprep.subr.mxu0 0.0
    %136 = vmatpush1.msra.mxu0 0.0
    %137 = vmatprep.subr.mxu0 0.0
    %138 = vmatpush1.msra.mxu0 0.0
    %139 = vmatprep.subr.mxu0 0.0
    %140 = vmatpush1.msra.mxu0 0.0
    %141 = vmatprep.subr.mxu0 0.0
    %142 = vmatpush1.msra.mxu0 0.0
    %143 = vmatprep.subr.mxu0 0.0
    %144 = vmatpush1.msra.mxu0 0.0
    %145 = vmatprep.subr.mxu0 0.0
    %146 = vmatpush1.msra.mxu0 0.0
    %147 = vmatprep.subr.mxu0 0.0
    %148 = vmatpush1.msra.mxu0 0.0
    %149 = vmatprep.subr.mxu0 0.0
    %150 = vmatpush1.msra.mxu0 0.0
    %151 = vmatprep.subr.mxu0 0.0
    %152 = vmatpush1.msra.mxu0 0.0
    %153 = vmatprep.mubr.f32.mxu0 0.0
    %154 = vmatmul.mubr.f32.gmra.mrb[0].mxu0 %v65
    %v155 = vpop.f32.mrb[0].mxu0
    %v156 = vadd.f32 %v87, %v155
    %v157 = vpop.f32.mrb[0].mxu0
    %158 = vdwg.mxu0
    %159 = vst [vmem:[#allocation5] sm:$0xff] %v156
    // Predicated region
    $region26: #{tpu_custom_call.1} parent=1 // pred_check
      _
    $region27: #{tpu_custom_call.1} parent=1 // pred_check_branch
      %161 = sbr.rel (0) target = $region29
    $region28: #{tpu_custom_call.1} parent=1 // pred_region
      %s163 = ssub.s32 128, 128
      %164 = vsyncadd [#allocation4], %s163
      %s166 = sshll.u32 [#allocation5], 4
      %s167 = int_to_ptr.vmem [resolvable:$true] %s166
      %169 = dma.vmem_to_hbm [thread:$0]  %s167, 128, %s5, [#allocation4]
    $region29: #{tpu_custom_call.1} parent=1 // pred_fallthru
      _
    // Predicated region
    $region30: #{tpu_custom_call.1} parent=1 // pred_check
      _
    $region31: #{tpu_custom_call.1} parent=1 // pred_check_branch
      %171 = sbr.rel (0) target = $region33
    $region32: #{tpu_custom_call.1} parent=1 // pred_region
      %172 = dma.done [#allocation4], 128
    $region33: #{tpu_custom_call.1} parent=1 // pred_fallthru
      _
    %173 = vsyncpa [#allocation3], 1
    %174 = vsyncpa [#allocation4], 1

</llo_original>
